<compile_context>
chip_gen: v5e
topology: v5e:2x2
jax: 0.10.0
libtpu: 0.0.40
codegen_flags: <defaults>
</compile_context>

<pallas_src>
import functools

import jax
import jax.numpy as jnp
from jax.experimental import pallas as pl
from jax.experimental.pallas import tpu as pltpu


def _round_up(x, m):
    return ((x + m - 1) // m) * m


def _mlp_kernel(x_ref, wf_ref, wd_ref, o_ref, acc_ref):
    # x_ref:   (tm, H)      tile of token rows
    # wf_ref:  (H, 2*ti)    fused [gate | up] weight chunk, (in, out) layout
    # wd_ref:  (ti, H)      down_proj weight chunk, (in, out) layout
    # o_ref:   (tm, H)      output tile (resident across the I axis)
    # acc_ref: (tm, H) f32  accumulator across the I (reduction) grid axis
    j = pl.program_id(1)

    @pl.when(j == 0)
    def _():
        acc_ref[...] = jnp.zeros_like(acc_ref)

    x = x_ref[...]
    # One wide gate+up matmul on the MXU, f32 accumulation.
    gu = jnp.dot(x, wf_ref[...], preferred_element_type=jnp.float32)
    ti = gu.shape[-1] // 2
    gate = gu[:, :ti]
    up = gu[:, ti:]
    # SiLU in f32: exp / reciprocal go to the EUP slot (free under MXU load).
    act = gate * pl.reciprocal(1.0 + jnp.exp(-gate), approx=False)
    h = (act * up).astype(wd_ref.dtype)
    acc_ref[...] += jnp.dot(h, wd_ref[...], preferred_element_type=jnp.float32)

    @pl.when(j == pl.num_programs(1) - 1)
    def _():
        o_ref[...] = acc_ref[...].astype(o_ref.dtype)


def prepare_mlp_weights(w_gate, w_up, w_down, *, ti=512, compute_dtype=None):
    """One-time weight prep (call once, NOT per forward).

    PyTorch nn.Linear weights are (out_features, in_features).  Returns:
      wf:   (nI, H, 2*ti)  per-I-chunk fused [gate | up] weights, (in, out)
      wd_t: (I_pad, H)     down_proj weight, (in, out) layout
    The intermediate dim is zero-padded to a multiple of ti; padded rows of
    wd_t are zero so they contribute nothing (exact).
    """
    inter, hidden = w_gate.shape
    ti = min(ti, _round_up(inter, 128))
    i_pad = _round_up(inter, ti)
    n_i = i_pad // ti

    def pad_cols(w_t):  # (H, I) -> (H, I_pad)
        return jnp.pad(w_t, ((0, 0), (0, i_pad - inter)))

    wg_t = pad_cols(w_gate.T)                                  # (H, I_pad)
    wu_t = pad_cols(w_up.T)                                    # (H, I_pad)
    wd_t = jnp.pad(w_down.T, ((0, i_pad - inter), (0, 0)))     # (I_pad, H)

    wg_c = wg_t.reshape(hidden, n_i, ti).transpose(1, 0, 2)    # (nI, H, ti)
    wu_c = wu_t.reshape(hidden, n_i, ti).transpose(1, 0, 2)    # (nI, H, ti)
    wf = jnp.concatenate([wg_c, wu_c], axis=-1)                # (nI, H, 2*ti)

    if compute_dtype is not None:
        wf = wf.astype(compute_dtype)
        wd_t = wd_t.astype(compute_dtype)
    return wf, wd_t


@functools.partial(jax.jit, static_argnames=("tm",))
def mlp_pallas(x, wf, wd_t, *, tm=256):
    """x: [..., hidden]; wf/wd_t from prepare_mlp_weights."""
    orig_shape = x.shape
    hidden = orig_shape[-1]
    n_i, h_w, two_ti = wf.shape
    ti = two_ti // 2
    assert h_w == hidden, "weight hidden dim does not match input"

    x2d = x.reshape(-1, hidden)
    m = x2d.shape[0]
    tm = min(tm, _round_up(m, 16))           # don't over-pad tiny batches
    m_pad = _round_up(m, tm)
    if m_pad != m:
        x2d = jnp.pad(x2d, ((0, m_pad - m), (0, 0)))

    itemsize = x2d.dtype.itemsize
    w_itemsize = wf.dtype.itemsize
    vmem_bytes = (2 * tm * hidden * itemsize          # x (double-buffered)
                  + 2 * hidden * two_ti * w_itemsize  # fused gate/up tile
                  + 2 * ti * hidden * w_itemsize      # down-proj tile
                  + 2 * tm * hidden * itemsize        # output tile
                  + tm * hidden * 4)                  # f32 accumulator
    vmem_limit = min(int(vmem_bytes * 1.5) + (2 << 20), 64 * 1024 * 1024)

    cost = pl.CostEstimate(
        flops=6 * m_pad * hidden * (n_i * ti),
        transcendentals=m_pad * n_i * ti,
        bytes_accessed=(x2d.size * itemsize + wf.size * w_itemsize
                        + wd_t.size * w_itemsize + m_pad * hidden * itemsize),
    )

    out2d = pl.pallas_call(
        _mlp_kernel,
        out_shape=jax.ShapeDtypeStruct((m_pad, hidden), x.dtype),
        grid_spec=pltpu.PrefetchScalarGridSpec(
            num_scalar_prefetch=0,
            grid=(m_pad // tm, n_i),
            in_specs=[
                pl.BlockSpec((tm, hidden), lambda i, j: (i, 0)),
                pl.BlockSpec((None, hidden, two_ti), lambda i, j: (j, 0, 0)),
                pl.BlockSpec((ti, hidden), lambda i, j: (j, 0)),
            ],
            out_specs=pl.BlockSpec((tm, hidden), lambda i, j: (i, 0)),
            scratch_shapes=[pltpu.VMEM((tm, hidden), jnp.float32)],
        ),
        compiler_params=pltpu.CompilerParams(
            dimension_semantics=("parallel", "arbitrary"),
            vmem_limit_bytes=vmem_limit,
        ),
        cost_estimate=cost,
    )(x2d, wf, wd_t)

    if m_pad != m:
        out2d = out2d[:m]
    return out2d.reshape(orig_shape)


def mlp_ref(x, w_gate, w_up, w_down):
    gate = x @ w_gate.T
    up = x @ w_up.T
    return (gate * jax.nn.sigmoid(gate) * up) @ w_down.T


if __name__ == "__main__":
    hidden_size = 128
    intermediate_size = 256

    key = jax.random.PRNGKey(0)
    kx, kg, ku, kd, kx2 = jax.random.split(key, 5)

    # PyTorch nn.Linear weight shape: (out_features, in_features)
    w_gate = jax.random.normal(kg, (intermediate_size, hidden_size), jnp.float32) * 0.05
    w_up = jax.random.normal(ku, (intermediate_size, hidden_size), jnp.float32) * 0.05
    w_down = jax.random.normal(kd, (hidden_size, intermediate_size), jnp.float32) * 0.05

    # One-time weight prep (transpose / fuse / chunk) outside the hot path.
    wf, wd_t = prepare_mlp_weights(w_gate, w_up, w_down)
    jax.block_until_ready((wf, wd_t))

    # Case 1: standard small batch.
    batch, seq = 2, 8
    x = jax.random.normal(kx, (batch, seq, hidden_size), jnp.float32)
    out = mlp_pallas(x, wf, wd_t)
    jax.block_until_ready(out)
    ref = mlp_ref(x, w_gate, w_up, w_down)
    assert out.shape == (batch, seq, hidden_size)
    assert jnp.allclose(out, ref, atol=2e-4, rtol=2e-4), "mismatch vs reference"

    # Case 2: ragged token count (exercises the padding path).
    x2 = jax.random.normal(kx2, (batch, 5, hidden_size), jnp.float32)
    out2 = mlp_pallas(x2, wf, wd_t)
    jax.block_until_ready(out2)
    ref2 = mlp_ref(x2, w_gate, w_up, w_down)
    assert jnp.allclose(out2, ref2, atol=2e-4, rtol=2e-4), "ragged mismatch"

    print("KERNEL_OK")
</pallas_src>

<mosaic_0001>
module attributes {stable_mosaic.version = 11 : i64} {
  func.func @_mlp_kernel(%arg0: i32, %arg1: i32, %arg2: memref<16x128xf32, #tpu.memory_space<vmem>>, %arg3: memref<1x128x512xf32, #tpu.memory_space<vmem>>, %arg4: memref<256x128xf32, #tpu.memory_space<vmem>>, %arg5: memref<16x128xf32, #tpu.memory_space<vmem>>, %arg6: memref<16x128xf32, #tpu.memory_space<vmem>>) attributes {dimension_semantics = [#tpu.dimension_semantics<parallel>, #tpu.dimension_semantics<arbitrary>], iteration_bounds = array<i64: 1, 1>, scalar_prefetch = 0 : i64, scratch_operands = 1 : i64, tpu.core_type = #tpu.core_type<tc>, window_params = [{transform_indices = @transform_0, window_bounds = array<i64: 16, 128>}, {transform_indices = @transform_1, window_bounds = array<i64: 1, 128, 512>}, {transform_indices = @transform_2, window_bounds = array<i64: 256, 128>}, {transform_indices = @transform_3, window_bounds = array<i64: 16, 128>}]} {
    %c0_i32 = arith.constant 0 : i32
    %0 = arith.cmpi eq, %arg1, %c0_i32 : i32
    %1 = arith.extui %0 : i1 to i32
    %c0_i32_0 = arith.constant 0 : i32
    %2 = arith.cmpi ne, %1, %c0_i32_0 : i32
    scf.if %2 {
      %cst_16 = arith.constant 0.000000e+00 : f32
      %25 = vector.broadcast %cst_16 : f32 to vector<16x128xf32>
      %c0_17 = arith.constant 0 : index
      %c0_18 = arith.constant 0 : index
      %26 = vector.load %arg6[%c0_17, %c0_18] : memref<16x128xf32, #tpu.memory_space<vmem>>, vector<16x128xf32>
      tpu.vector_store %arg6[%c0_17, %c0_18], %25 {strides = array<i32>} : memref<16x128xf32, #tpu.memory_space<vmem>>, vector<16x128xf32>,
    } else {
    }
    %c0 = arith.constant 0 : index
    %c0_1 = arith.constant 0 : index
    %3 = vector.load %arg2[%c0, %c0_1] : memref<16x128xf32, #tpu.memory_space<vmem>>, vector<16x128xf32>
    %c0_2 = arith.constant 0 : index
    %c0_3 = arith.constant 0 : index
    %c0_4 = arith.constant 0 : index
    %4 = vector.load %arg3[%c0_2, %c0_3, %c0_4] : memref<1x128x512xf32, #tpu.memory_space<vmem>>, vector<1x128x512xf32>
    %5 = vector.shape_cast %4 : vector<1x128x512xf32> to vector<128x512xf32>
    %cst = arith.constant dense<0.000000e+00> : vector<16x512xf32>
    %6 = tpu.matmul %3, %5, %cst {dimension_numbers = #tpu.dot_dimension_numbers<[1], [0], [0], [1], [0, 0, 1, 1], [], []>} : vector<16x128xf32>, vector<128x512xf32>, vector<16x512xf32> -> vector<16x512xf32>
    %7 = vector.extract_strided_slice %6 {offsets = [0, 0], sizes = [16, 256], strides = [1, 1]} : vector<16x512xf32> to vector<16x256xf32>
    %8 = vector.extract_strided_slice %6 {offsets = [0, 256], sizes = [16, 256], strides = [1, 1]} : vector<16x512xf32> to vector<16x256xf32>
    %cst_5 = arith.constant 0.000000e+00 : f32
    %9 = vector.broadcast %cst_5 : f32 to vector<16x256xf32>
    %10 = arith.subf %9, %7 : vector<16x256xf32>
    %11 = math.exp %10 : vector<16x256xf32>
    %cst_6 = arith.constant 1.000000e+00 : f32
    %12 = vector.broadcast %cst_6 : f32 to vector<16x256xf32>
    %13 = arith.addf %12, %11 : vector<16x256xf32>
    %14 = tpu.reciprocal %13 : vector<16x256xf32> -> vector<16x256xf32>
    %15 = arith.mulf %7, %14 : vector<16x256xf32>
    %16 = arith.mulf %15, %8 : vector<16x256xf32>
    %c0_7 = arith.constant 0 : index
    %c0_8 = arith.constant 0 : index
    %17 = vector.load %arg6[%c0_7, %c0_8] : memref<16x128xf32, #tpu.memory_space<vmem>>, vector<16x128xf32>
    %c0_9 = arith.constant 0 : index
    %c0_10 = arith.constant 0 : index
    %18 = vector.load %arg4[%c0_9, %c0_10] : memref<256x128xf32, #tpu.memory_space<vmem>>, vector<256x128xf32>
    %cst_11 = arith.constant dense<0.000000e+00> : vector<16x128xf32>
    %19 = tpu.matmul %16, %18, %cst_11 {dimension_numbers = #tpu.dot_dimension_numbers<[1], [0], [0], [1], [0, 0, 1, 1], [], []>} : vector<16x256xf32>, vector<256x128xf32>, vector<16x128xf32> -> vector<16x128xf32>
    %20 = arith.addf %17, %19 : vector<16x128xf32>
    %c0_12 = arith.constant 0 : index
    %c0_13 = arith.constant 0 : index
    %21 = vector.load %arg6[%c0_12, %c0_13] : memref<16x128xf32, #tpu.memory_space<vmem>>, vector<16x128xf32>
    tpu.vector_store %arg6[%c0_12, %c0_13], %20 {strides = array<i32>} : memref<16x128xf32, #tpu.memory_space<vmem>>, vector<16x128xf32>,
    %c0_i32_14 = arith.constant 0 : i32
    %22 = arith.cmpi eq, %arg1, %c0_i32_14 : i32
    %23 = arith.extui %22 : i1 to i32
    %c0_i32_15 = arith.constant 0 : i32
    %24 = arith.cmpi ne, %23, %c0_i32_15 : i32
    scf.if %24 {
      %c0_16 = arith.constant 0 : index
      %c0_17 = arith.constant 0 : index
      %25 = vector.load %arg6[%c0_16, %c0_17] : memref<16x128xf32, #tpu.memory_space<vmem>>, vector<16x128xf32>
      %c0_18 = arith.constant 0 : index
      %c0_19 = arith.constant 0 : index
      %26 = vector.load %arg5[%c0_18, %c0_19] : memref<16x128xf32, #tpu.memory_space<vmem>>, vector<16x128xf32>
      tpu.vector_store %arg5[%c0_18, %c0_19], %25 {strides = array<i32>} : memref<16x128xf32, #tpu.memory_space<vmem>>, vector<16x128xf32>,
    } else {
    }
    return
  }
  func.func @transform_0(%arg0: i32, %arg1: i32) -> (i32, i32) {
    %c0_i32 = arith.constant 0 : i32
    %c0_i32_0 = arith.constant 0 : i32
    return %arg0, %c0_i32 : i32, i32
  }
  func.func @transform_1(%arg0: i32, %arg1: i32) -> (i32, i32, i32) {
    %c0_i32 = arith.constant 0 : i32
    %c0_i32_0 = arith.constant 0 : i32
    %c0_i32_1 = arith.constant 0 : i32
    return %arg1, %c0_i32, %c0_i32_0 : i32, i32, i32
  }
  func.func @transform_2(%arg0: i32, %arg1: i32) -> (i32, i32) {
    %c0_i32 = arith.constant 0 : i32
    %c0_i32_0 = arith.constant 0 : i32
    return %arg1, %c0_i32 : i32, i32
  }
  func.func @transform_3(%arg0: i32, %arg1: i32) -> (i32, i32) {
    %c0_i32 = arith.constant 0 : i32
    %c0_i32_0 = arith.constant 0 : i32
    return %arg0, %c0_i32 : i32, i32
  }
}

</mosaic_0001>

<llo_original>
// kernel: mlp_pallas.1
$region0: #{mlp_pallas.1}
  #allocation0 [shape = 'u32[]', space=smem, size = 0x4, offset = 0x4, fixed_abs, tag = 'smem constant byte address 0x4 - core index']
  #allocation1 [shape = 'u32[72,128]{1,0:T(1,128)}', space=vmem, size = 0x9000, scoped, tag = 'internal scratch']
  #allocation2 [shape = 'f32[16,128]{1,0:T(8,128)}', space=vmem, size = 0x2000, scoped, tag = 'scratch operand']
  %s0 = inlined_call_operand.hbm [shape: f32[16,128], index: 0, kind: input, shape index: {}]
  %s1 = inlined_call_operand.hbm [shape: f32[1,128,512], index: 1, kind: input, shape index: {}]
  %s2 = inlined_call_operand.hbm [shape: f32[256,128], index: 2, kind: input, shape index: {}]
  %s3 = inlined_call_operand.hbm [shape: f32[16,128], index: 3, kind: output, shape index: {}]
  %s4 = sld [smem:[#allocation0]]
  $region42: #{mlp_pallas.1} parent=0
    _
  %s6 = ssub.s32 1, %s4
  %s7 = scalar_select 0, %s6, %s4
  $region1: #{mlp_pallas.1} parent=0
    #allocation3 [shape = 'u8[8192]{0}', space=vmem, size = 0x2000, scoped, tag = 'input window, operand 0, single buffered']
    #allocation4 [shape = 's32[1]{0}', space=sflag, size = 0x4, scoped, tag = 'scoped memory for mlp_pallas.1']
    #allocation5 [shape = 's32[1]{0}', space=sflag, size = 0x4, scoped, tag = 'scoped memory for mlp_pallas.1']
    #allocation6 [shape = 'u8[262144]{0}', space=vmem, size = 0x40000, scoped, tag = 'input window, operand 1, single buffered']
    #allocation7 [shape = 's32[1]{0}', space=sflag, size = 0x4, scoped, tag = 'scoped memory for mlp_pallas.1']
    #allocation8 [shape = 'u8[131072]{0}', space=vmem, size = 0x20000, scoped, tag = 'input window, operand 2, single buffered']
    #allocation9 [shape = 'u8[8192]{0}', space=vmem, size = 0x2000, scoped, tag = 'output window, operand 0, single buffered']
    %8 = vsyncpa [#allocation4], 0
    %9 = vsyncpa [#allocation7], 0
    %10 = vsyncpa [#allocation5], 0
    // Predicated region
    $region2: #{mlp_pallas.1} parent=1 // pred_check
      _
    $region3: #{mlp_pallas.1} parent=1 // pred_check_branch
      %12 = sbr.rel (0) target = $region5
    $region4: #{mlp_pallas.1} parent=1 // pred_region
      %14 = vsyncadd [#allocation4], 0
      %s15 = sshll.u32 %s0, 4
      %s16 = int_to_ptr.hbm [resolvable:$true] %s15
      %s17 = sshll.u32 [#allocation3], 4
      %s18 = int_to_ptr.vmem [resolvable:$true] %s17
      %23 = dma.hbm_to_vmem [thread:$0]  %s16, 256, %s18, [#allocation4], 128, 128, 8
    $region5: #{mlp_pallas.1} parent=1 // pred_fallthru
      _
    // Predicated region
    $region6: #{mlp_pallas.1} parent=1 // pred_check
      _
    $region7: #{mlp_pallas.1} parent=1 // pred_check_branch
      %25 = sbr.rel (0) target = $region9
    $region8: #{mlp_pallas.1} parent=1 // pred_region
      %27 = vsyncadd [#allocation7], 0
      %s28 = sshll.u32 %s1, 4
      %s29 = int_to_ptr.hbm [resolvable:$true] %s28
      %s30 = sshll.u32 [#allocation6], 4
      %s31 = int_to_ptr.vmem [resolvable:$true] %s30
      %36 = dma.hbm_to_vmem [thread:$0]  %s29, 8192, %s31, [#allocation7], 512, 512, 32
    $region9: #{mlp_pallas.1} parent=1 // pred_fallthru
      _
    // Predicated region
    $region10: #{mlp_pallas.1} parent=1 // pred_check
      _
    $region11: #{mlp_pallas.1} parent=1 // pred_check_branch
      %38 = sbr.rel (0) target = $region13
    $region12: #{mlp_pallas.1} parent=1 // pred_region
      %40 = vsyncadd [#allocation7], 0
      %s41 = sshll.u32 %s2, 4
      %s42 = int_to_ptr.hbm [resolvable:$true] %s41
      %s43 = sshll.u32 [#allocation8], 4
      %s44 = int_to_ptr.vmem [resolvable:$true] %s43
      %49 = dma.hbm_to_vmem [thread:$0]  %s42, 4096, %s44, [#allocation7], 128, 128, 8
    $region13: #{mlp_pallas.1} parent=1 // pred_fallthru
      _
    // Predicated region
    $region14: #{mlp_pallas.1} parent=1 // pred_check
      _
    $region15: #{mlp_pallas.1} parent=1 // pred_check_branch
      %51 = sbr.rel (0) target = $region17
    $region16: #{mlp_pallas.1} parent=1 // pred_region
      %53 = dma.done [#allocation4], 256
    $region17: #{mlp_pallas.1} parent=1 // pred_fallthru
      _
    // Predicated region
    $region18: #{mlp_pallas.1} parent=1 // pred_check
      _
    $region19: #{mlp_pallas.1} parent=1 // pred_check_branch
      %55 = sbr.rel (0) target = $region21
    $region20: #{mlp_pallas.1} parent=1 // pred_region
      %57 = dma.done [#allocation7], 8192
    $region21: #{mlp_pallas.1} parent=1 // pred_fallthru
      _
    // Predicated region
    $region22: #{mlp_pallas.1} parent=1 // pred_check
      _
    $region23: #{mlp_pallas.1} parent=1 // pred_check_branch
      %59 = sbr.rel (0) target = $region25
    $region24: #{mlp_pallas.1} parent=1 // pred_region
      %61 = dma.done [#allocation7], 4096
    $region25: #{mlp_pallas.1} parent=1 // pred_fallthru
      _
    %p62 = scmp.eq.s32.totalorder 0, 0
    // Predicated region
    $region26: #{mlp_pallas.1} parent=1 // pred_check
      %p63 = pneg %p62
    $region27: #{mlp_pallas.1} parent=1 // pred_check_branch
      %65 = sbr.rel (%p63) target = $region29
    $region28: #{mlp_pallas.1} parent=1 // pred_region
      %66 = vst [vmem:[#allocation2] sm:$0xff] 0.0
      %67 = vst [vmem:[#allocation2 + $0x8] sm:$0xff] 0.0
    $region29: #{mlp_pallas.1} parent=1 // pred_fallthru
      _
    %v68 = vld [vmem:[#allocation3] sm:$0xff]
    %v69 = vld [vmem:[#allocation3 + $0x8] sm:$0xff]
    %v70 = vld [vmem:[#allocation6] sm:$0xff]
    %v71 = vld [vmem:[#allocation6 + $0x8] sm:$0xff]
    %v72 = vld [vmem:[#allocation6 + $0x10] sm:$0xff]
    %v73 = vld [vmem:[#allocation6 + $0x18] sm:$0xff]
    %v74 = vld [vmem:[#allocation6 + $0x20] sm:$0xff]
    %v75 = vld [vmem:[#allocation6 + $0x28] sm:$0xff]
    %v76 = vld [vmem:[#allocation6 + $0x30] sm:$0xff]
    %v77 = vld [vmem:[#allocation6 + $0x38] sm:$0xff]
    %v78 = vld [vmem:[#allocation6 + $0x40] sm:$0xff]
    %v79 = vld [vmem:[#allocation6 + $0x48] sm:$0xff]
    %v80 = vld [vmem:[#allocation6 + $0x50] sm:$0xff]
    %v81 = vld [vmem:[#allocation6 + $0x58] sm:$0xff]
    %v82 = vld [vmem:[#allocation6 + $0x60] sm:$0xff]
    %v83 = vld [vmem:[#allocation6 + $0x68] sm:$0xff]
    %v84 = vld [vmem:[#allocation6 + $0x70] sm:$0xff]
    %v85 = vld [vmem:[#allocation6 + $0x78] sm:$0xff]
    %v86 = vld [vmem:[#allocation6 + $0x80] sm:$0xff]
    %v87 = vld [vmem:[#allocation6 + $0x88] sm:$0xff]
    %v88 = vld [vmem:[#allocation6 + $0x90] sm:$0xff]
    %v89 = vld [vmem:[#allocation6 + $0x98] sm:$0xff]
    %v90 = vld [vmem:[#allocation6 + $0xa0] sm:$0xff]
    %v91 = vld [vmem:[#allocation6 + $0xa8] sm:$0xff]
    %v92 = vld [vmem:[#allocation6 + $0xb0] sm:$0xff]
    %v93 = vld [vmem:[#allocation6 + $0xb8] sm:$0xff]
    %v94 = vld [vmem:[#allocation6 + $0xc0] sm:$0xff]
    %v95 = vld [vmem:[#allocation6 + $0xc8] sm:$0xff]
    %v96 = vld [vmem:[#allocation6 + $0xd0] sm:$0xff]
    %v97 = vld [vmem:[#allocation6 + $0xd8] sm:$0xff]
    %v98 = vld [vmem:[#allocation6 + $0xe0] sm:$0xff]
    %v99 = vld [vmem:[#allocation6 + $0xe8] sm:$0xff]
    %v100 = vld [vmem:[#allocation6 + $0xf0] sm:$0xff]
    %v101 = vld [vmem:[#allocation6 + $0xf8] sm:$0xff]
    %v102 = vld [vmem:[#allocation6 + $0x100] sm:$0xff]
    %v103 = vld [vmem:[#allocation6 + $0x108] sm:$0xff]
    %v104 = vld [vmem:[#allocation6 + $0x110] sm:$0xff]
    %v105 = vld [vmem:[#allocation6 + $0x118] sm:$0xff]
    %v106 = vld [vmem:[#allocation6 + $0x120] sm:$0xff]
    %v107 = vld [vmem:[#allocation6 + $0x128] sm:$0xff]
    %v108 = vld [vmem:[#allocation6 + $0x130] sm:$0xff]
    %v109 = vld [vmem:[#allocation6 + $0x138] sm:$0xff]
    %v110 = vld [vmem:[#allocation6 + $0x140] sm:$0xff]
    %v111 = vld [vmem:[#allocation6 + $0x148] sm:$0xff]
    %v112 = vld [vmem:[#allocation6 + $0x150] sm:$0xff]
    %v113 = vld [vmem:[#allocation6 + $0x158] sm:$0xff]
    %v114 = vld [vmem:[#allocation6 + $0x160] sm:$0xff]
    %v115 = vld [vmem:[#allocation6 + $0x168] sm:$0xff]
    %v116 = vld [vmem:[#allocation6 + $0x170] sm:$0xff]
    %v117 = vld [vmem:[#allocation6 + $0x178] sm:$0xff]
    %v118 = vld [vmem:[#allocation6 + $0x180] sm:$0xff]
    %v119 = vld [vmem:[#allocation6 + $0x188] sm:$0xff]
    %v120 = vld [vmem:[#allocation6 + $0x190] sm:$0xff]
    %v121 = vld [vmem:[#allocation6 + $0x198] sm:$0xff]
    %v122 = vld [vmem:[#allocation6 + $0x1a0] sm:$0xff]
    %v123 = vld [vmem:[#allocation6 + $0x1a8] sm:$0xff]
    %v124 = vld [vmem:[#allocation6 + $0x1b0] sm:$0xff]
    %v125 = vld [vmem:[#allocation6 + $0x1b8] sm:$0xff]
    %v126 = vld [vmem:[#allocation6 + $0x1c0] sm:$0xff]
    %v127 = vld [vmem:[#allocation6 + $0x1c8] sm:$0xff]
    %v128 = vld [vmem:[#allocation6 + $0x1d0] sm:$0xff]
    %v129 = vld [vmem:[#allocation6 + $0x1d8] sm:$0xff]
    %v130 = vld [vmem:[#allocation6 + $0x1e0] sm:$0xff]
    %v131 = vld [vmem:[#allocation6 + $0x1e8] sm:$0xff]
    %v132 = vld [vmem:[#allocation6 + $0x1f0] sm:$0xff]
    %v133 = vld [vmem:[#allocation6 + $0x1f8] sm:$0xff]
    %134 = vmatpush.msra.mxu0 %v130
    %135 = vmatpush.msra.mxu0 %v126
    %136 = vmatpush.msra.mxu0 %v122
    %137 = vmatpush.msra.mxu0 %v118
    %138 = vmatpush.msra.mxu0 %v114
    %139 = vmatpush.msra.mxu0 %v110
    %140 = vmatpush.msra.mxu0 %v106
    %141 = vmatpush.msra.mxu0 %v102
    %142 = vmatpush.msra.mxu0 %v98
    %143 = vmatpush.msra.mxu0 %v94
    %144 = vmatpush.msra.mxu0 %v90
    %145 = vmatpush.msra.mxu0 %v86
    %146 = vmatpush.msra.mxu0 %v82
    %147 = vmatpush.msra.mxu0 %v78
    %148 = vmatpush.msra.mxu0 %v74
    %149 = vmatpush.msra.mxu0 %v70
    %150 = vmatmul.f32.gmra.mxu0 %v68
    %v151 = vpop.f32.mrf.mxu0
    %v152 = vadd.f32 0.0, %v151
    %153 = vmatmul.f32.gmra.mxu0 %v69
    %v154 = vpop.f32.mrf.mxu0
    %v155 = vadd.f32 0.0, %v154
    %156 = vdwg.mxu0
    %157 = vmatpush.msra.mxu0 %v131
    %158 = vmatpush.msra.mxu0 %v127
    %159 = vmatpush.msra.mxu0 %v123
    %160 = vmatpush.msra.mxu0 %v119
    %161 = vmatpush.msra.mxu0 %v115
    %162 = vmatpush.msra.mxu0 %v111
    %163 = vmatpush.msra.mxu0 %v107
    %164 = vmatpush.msra.mxu0 %v103
    %165 = vmatpush.msra.mxu0 %v99
    %166 = vmatpush.msra.mxu0 %v95
    %167 = vmatpush.msra.mxu0 %v91
    %168 = vmatpush.msra.mxu0 %v87
    %169 = vmatpush.msra.mxu0 %v83
    %170 = vmatpush.msra.mxu0 %v79
    %171 = vmatpush.msra.mxu0 %v75
    %172 = vmatpush.msra.mxu0 %v71
    %173 = vmatmul.f32.gmra.mxu0 %v68
    %v174 = vpop.f32.mrf.mxu0
    %v175 = vadd.f32 0.0, %v174
    %176 = vmatmul.f32.gmra.mxu0 %v69
    %v177 = vpop.f32.mrf.mxu0
    %v178 = vadd.f32 0.0, %v177
    %179 = vdwg.mxu0
    %180 = vmatpush.msra.mxu0 %v132
    %181 = vmatpush.msra.mxu0 %v128
    %182 = vmatpush.msra.mxu0 %v124
    %183 = vmatpush.msra.mxu0 %v120
    %184 = vmatpush.msra.mxu0 %v116
    %185 = vmatpush.msra.mxu0 %v112
    %186 = vmatpush.msra.mxu0 %v108
    %187 = vmatpush.msra.mxu0 %v104
    %188 = vmatpush.msra.mxu0 %v100
    %189 = vmatpush.msra.mxu0 %v96
    %190 = vmatpush.msra.mxu0 %v92
    %191 = vmatpush.msra.mxu0 %v88
    %192 = vmatpush.msra.mxu0 %v84
    %193 = vmatpush.msra.mxu0 %v80
    %194 = vmatpush.msra.mxu0 %v76
    %195 = vmatpush.msra.mxu0 %v72
    %196 = vmatmul.f32.gmra.mxu0 %v68
    %v197 = vpop.f32.mrf.mxu0
    %v198 = vadd.f32 0.0, %v197
    %199 = vmatmul.f32.gmra.mxu0 %v69
    %v200 = vpop.f32.mrf.mxu0
    %v201 = vadd.f32 0.0, %v200
    %202 = vdwg.mxu0
    %203 = vmatpush.msra.mxu0 %v133
    %204 = vmatpush.msra.mxu0 %v129
    %205 = vmatpush.msra.mxu0 %v125
    %206 = vmatpush.msra.mxu0 %v121
    %207 = vmatpush.msra.mxu0 %v117
    %208 = vmatpush.msra.mxu0 %v113
    %209 = vmatpush.msra.mxu0 %v109
    %210 = vmatpush.msra.mxu0 %v105
    %211 = vmatpush.msra.mxu0 %v101
    %212 = vmatpush.msra.mxu0 %v97
    %213 = vmatpush.msra.mxu0 %v93
    %214 = vmatpush.msra.mxu0 %v89
    %215 = vmatpush.msra.mxu0 %v85
    %216 = vmatpush.msra.mxu0 %v81
    %217 = vmatpush.msra.mxu0 %v77
    %218 = vmatpush.msra.mxu0 %v73
    %219 = vmatmul.f32.gmra.mxu0 %v68
    %v220 = vpop.f32.mrf.mxu0
    %v221 = vadd.f32 0.0, %v220
    %222 = vmatmul.f32.gmra.mxu0 %v69
    %v223 = vpop.f32.mrf.mxu0
    %v224 = vadd.f32 0.0, %v223
    %225 = vdwg.mxu0
    %v226 = vsub.f32 0.0, %v152
    %v227 = vsub.f32 0.0, %v175
    %v228 = vsub.f32 0.0, %v155
    %v229 = vsub.f32 0.0, %v178
    %v230 = vmul.f32 %v226, 1.442695
    %v231 = vpow.pop %v230
    %v232 = vmul.f32 %v227, 1.442695
    %v233 = vpow.pop %v232
    %v234 = vmul.f32 %v228, 1.442695
    %v235 = vpow.pop %v234
    %v236 = vmul.f32 %v229, 1.442695
    %v237 = vpow.pop %v236
    %v238 = vadd.f32 %v231, 1.0
    %v239 = vadd.f32 %v233, 1.0
    %v240 = vadd.f32 %v235, 1.0
    %v241 = vadd.f32 %v237, 1.0
    %v242 = vrcp.pop %v238
    %v243 = vmul.f32 %v238, %v242
    %v244 = vsub.f32 1.0, %v243
    %v245 = vmul.f32 %v242, %v244
    %v246 = vadd.f32 %v242, %v245
    %vm247 = vweird.f32 %v238
    %vm248 = vweird.f32 %v242
    %vm249 = vmor %vm247, %vm248
    %v250 = vsel %vm249, %v242, %v246
    %v251 = vand.u32 2147483647, %v238
    %vm252 = vcmp.eq.f32.partialorder %v251, 8.507059e+37
    %v253 = vand.u32 %v238, 2147483648
    %v254 = vor.u32 1.1754944e-38, %v253
    %v255 = vsel %vm252, %v254, %v250
    %v256 = vrcp.pop %v239
    %v257 = vmul.f32 %v239, %v256
    %v258 = vsub.f32 1.0, %v257
    %v259 = vmul.f32 %v256, %v258
    %v260 = vadd.f32 %v256, %v259
    %vm261 = vweird.f32 %v239
    %vm262 = vweird.f32 %v256
    %vm263 = vmor %vm261, %vm262
    %v264 = vsel %vm263, %v256, %v260
    %v265 = vand.u32 2147483647, %v239
    %vm266 = vcmp.eq.f32.partialorder %v265, 8.507059e+37
    %v267 = vand.u32 %v239, 2147483648
    %v268 = vor.u32 1.1754944e-38, %v267
    %v269 = vsel %vm266, %v268, %v264
    %v270 = vrcp.pop %v240
    %v271 = vmul.f32 %v240, %v270
    %v272 = vsub.f32 1.0, %v271
    %v273 = vmul.f32 %v270, %v272
    %v274 = vadd.f32 %v270, %v273
    %vm275 = vweird.f32 %v240
    %vm276 = vweird.f32 %v270
    %vm277 = vmor %vm275, %vm276
    %v278 = vsel %vm277, %v270, %v274
    %v279 = vand.u32 2147483647, %v240
    %vm280 = vcmp.eq.f32.partialorder %v279, 8.507059e+37
    %v281 = vand.u32 %v240, 2147483648
    %v282 = vor.u32 1.1754944e-38, %v281
    %v283 = vsel %vm280, %v282, %v278
    %v284 = vrcp.pop %v241
    %v285 = vmul.f32 %v241, %v284
    %v286 = vsub.f32 1.0, %v285
    %v287 = vmul.f32 %v284, %v286
    %v288 = vadd.f32 %v284, %v287
    %vm289 = vweird.f32 %v241
    %vm290 = vweird.f32 %v284
    %vm291 = vmor %vm289, %vm290
    %v292 = vsel %vm291, %v284, %v288
    %v293 = vand.u32 2147483647, %v241
    %vm294 = vcmp.eq.f32.partialorder %v293, 8.507059e+37
    %v295 = vand.u32 %v241, 2147483648
    %v296 = vor.u32 1.1754944e-38, %v295
    %v297 = vsel %vm294, %v296, %v292
    %v298 = vmul.f32 %v152, %v255
    %v299 = vmul.f32 %v175, %v269
    %v300 = vmul.f32 %v155, %v283
    %v301 = vmul.f32 %v178, %v297
    %v302 = vmul.f32 %v298, %v198
    %v303 = vmul.f32 %v299, %v221
    %v304 = vmul.f32 %v300, %v201
    %v305 = vmul.f32 %v301, %v224
    %v306 = vld [vmem:[#allocation2] sm:$0xff]
    %v307 = vld [vmem:[#allocation2 + $0x8] sm:$0xff]
    %v308 = vld [vmem:[#allocation8] sm:$0xff]
    %v309 = vld [vmem:[#allocation8 + $0x8] sm:$0xff]
    %v310 = vld [vmem:[#allocation8 + $0x10] sm:$0xff]
    %v311 = vld [vmem:[#allocation8 + $0x18] sm:$0xff]
    %v312 = vld [vmem:[#allocation8 + $0x20] sm:$0xff]
    %v313 = vld [vmem:[#allocation8 + $0x28] sm:$0xff]
    %v314 = vld [vmem:[#allocation8 + $0x30] sm:$0xff]
    %v315 = vld [vmem:[#allocation8 + $0x38] sm:$0xff]
    %v316 = vld [vmem:[#allocation8 + $0x40] sm:$0xff]
    %v317 = vld [vmem:[#allocation8 + $0x48] sm:$0xff]
    %v318 = vld [vmem:[#allocation8 + $0x50] sm:$0xff]
    %v319 = vld [vmem:[#allocation8 + $0x58] sm:$0xff]
    %v320 = vld [vmem:[#allocation8 + $0x60] sm:$0xff]
    %v321 = vld [vmem:[#allocation8 + $0x68] sm:$0xff]
    %v322 = vld [vmem:[#allocation8 + $0x70] sm:$0xff]
    %v323 = vld [vmem:[#allocation8 + $0x78] sm:$0xff]
    %v324 = vld [vmem:[#allocation8 + $0x80] sm:$0xff]
    %v325 = vld [vmem:[#allocation8 + $0x88] sm:$0xff]
    %v326 = vld [vmem:[#allocation8 + $0x90] sm:$0xff]
    %v327 = vld [vmem:[#allocation8 + $0x98] sm:$0xff]
    %v328 = vld [vmem:[#allocation8 + $0xa0] sm:$0xff]
    %v329 = vld [vmem:[#allocation8 + $0xa8] sm:$0xff]
    %v330 = vld [vmem:[#allocation8 + $0xb0] sm:$0xff]
    %v331 = vld [vmem:[#allocation8 + $0xb8] sm:$0xff]
    %v332 = vld [vmem:[#allocation8 + $0xc0] sm:$0xff]
    %v333 = vld [vmem:[#allocation8 + $0xc8] sm:$0xff]
    %v334 = vld [vmem:[#allocation8 + $0xd0] sm:$0xff]
    %v335 = vld [vmem:[#allocation8 + $0xd8] sm:$0xff]
    %v336 = vld [vmem:[#allocation8 + $0xe0] sm:$0xff]
    %v337 = vld [vmem:[#allocation8 + $0xe8] sm:$0xff]
    %v338 = vld [vmem:[#allocation8 + $0xf0] sm:$0xff]
    %v339 = vld [vmem:[#allocation8 + $0xf8] sm:$0xff]
    %340 = vmatpush.msra.mxu0 %v323
    %341 = vmatpush.msra.mxu0 %v322
    %342 = vmatpush.msra.mxu0 %v321
    %343 = vmatpush.msra.mxu0 %v320
    %344 = vmatpush.msra.mxu0 %v319
    %345 = vmatpush.msra.mxu0 %v318
    %346 = vmatpush.msra.mxu0 %v317
    %347 = vmatpush.msra.mxu0 %v316
    %348 = vmatpush.msra.mxu0 %v315
    %349 = vmatpush.msra.mxu0 %v314
    %350 = vmatpush.msra.mxu0 %v313
    %351 = vmatpush.msra.mxu0 %v312
    %352 = vmatpush.msra.mxu0 %v311
    %353 = vmatpush.msra.mxu0 %v310
    %354 = vmatpush.msra.mxu0 %v309
    %355 = vmatpush.msra.mxu0 %v308
    %356 = vmatmul.f32.gmra.mxu0 %v302
    %v357 = vpop.f32.mrf.mxu0
    %v358 = vadd.f32 0.0, %v357
    %359 = vmatmul.f32.gmra.mxu0 %v304
    %v360 = vpop.f32.mrf.mxu0
    %v361 = vadd.f32 0.0, %v360
    %362 = vdwg.mxu0
    %363 = vmatpush.msra.mxu0 %v339
    %364 = vmatpush.msra.mxu0 %v338
    %365 = vmatpush.msra.mxu0 %v337
    %366 = vmatpush.msra.mxu0 %v336
    %367 = vmatpush.msra.mxu0 %v335
    %368 = vmatpush.msra.mxu0 %v334
    %369 = vmatpush.msra.mxu0 %v333
    %370 = vmatpush.msra.mxu0 %v332
    %371 = vmatpush.msra.mxu0 %v331
    %372 = vmatpush.msra.mxu0 %v330
    %373 = vmatpush.msra.mxu0 %v329
    %374 = vmatpush.msra.mxu0 %v328
    %375 = vmatpush.msra.mxu0 %v327
    %376 = vmatpush.msra.mxu0 %v326
    %377 = vmatpush.msra.mxu0 %v325
    %378 = vmatpush.msra.mxu0 %v324
    %379 = vmatmul.f32.gmra.mxu0 %v303
    %v380 = vpop.f32.mrf.mxu0
    %v381 = vadd.f32 %v358, %v380
    %382 = vmatmul.f32.gmra.mxu0 %v305
    %v383 = vpop.f32.mrf.mxu0
    %v384 = vadd.f32 %v361, %v383
    %385 = vdwg.mxu0
    %v386 = vadd.f32 %v306, %v381
    %v387 = vadd.f32 %v307, %v384
    %388 = vst [vmem:[#allocation2] sm:$0xff] %v386
    %389 = vst [vmem:[#allocation2 + $0x8] sm:$0xff] %v387
    // Predicated region
    $region30: #{mlp_pallas.1} parent=1 // pred_check
      %p390 = pneg %p62
    $region31: #{mlp_pallas.1} parent=1 // pred_check_branch
      %392 = sbr.rel (%p390) target = $region33
    $region32: #{mlp_pallas.1} parent=1 // pred_region
      %v393 = vld [vmem:[#allocation2] sm:$0xff]
      %v394 = vld [vmem:[#allocation2 + $0x8] sm:$0xff]
      %395 = vst [vmem:[#allocation9] sm:$0xff] %v393
      %396 = vst [vmem:[#allocation9 + $0x8] sm:$0xff] %v394
    $region33: #{mlp_pallas.1} parent=1 // pred_fallthru
      _
    // Predicated region
    $region34: #{mlp_pallas.1} parent=1 // pred_check
      _
    $region35: #{mlp_pallas.1} parent=1 // pred_check_branch
      %398 = sbr.rel (0) target = $region37
    $region36: #{mlp_pallas.1} parent=1 // pred_region
      %400 = vsyncadd [#allocation5], 0
      %s401 = sshll.u32 [#allocation9], 4
      %s402 = int_to_ptr.vmem [resolvable:$true] %s401
      %s403 = sshll.u32 %s3, 4
      %s404 = int_to_ptr.hbm [resolvable:$true] %s403
      %409 = dma.vmem_to_hbm [thread:$0]  %s402, 256, %s404, [#allocation5], 128, 128, 8
    $region37: #{mlp_pallas.1} parent=1 // pred_fallthru
      _
    // Predicated region
    $region38: #{mlp_pallas.1} parent=1 // pred_check
      _
    $region39: #{mlp_pallas.1} parent=1 // pred_check_branch
      %411 = sbr.rel (0) target = $region41
    $region40: #{mlp_pallas.1} parent=1 // pred_region
      %413 = dma.done [#allocation5], 256
    $region41: #{mlp_pallas.1} parent=1 // pred_fallthru
      _
    %414 = vsyncpa [#allocation4], 1
    %415 = vsyncpa [#allocation7], 1
    %416 = vsyncpa [#allocation5], 1

</llo_original>
